<compile_context>
chip_gen: v5e
topology: v5e:2x2
jax: 0.10.0
libtpu: 0.0.40
codegen_flags: <defaults>
</compile_context>

<pallas_src>
import functools

import numpy as np
import jax
import jax.numpy as jnp
from jax.experimental import pallas as pl
from jax.experimental.pallas import tpu as pltpu

EULER_GAMMA = 0.5772156649015329
F32_TINY = float(np.finfo(np.float32).tiny)


def _round_up(x, m):
    return ((x + m - 1) // m) * m


def _vmem_plan():
    """Returns (scoped-VMEM limit to request, byte budget for tiles)."""
    try:
        cap = int(getattr(pltpu.get_tpu_info(), "vmem_capacity_bytes", 128 << 20))
    except Exception:
        cap = 64 << 20
    # v7x only has 64 MiB physical VMEM per TensorCore; stay well below it
    # everywhere (48 MiB limit, half of which is budgeted for our tiles).
    limit = int(min(cap * 3 // 4, 48 << 20))
    return limit, limit // 2


def _choose_tile(batch, d):
    """Lane columns per grid step (multiple of 128), padded batch, VMEM limit."""
    limit, budget = _vmem_plan()
    # Per lane-column bytes: (tb, 4D) input double-buffered + ~14 live f32
    # intermediates in (D, tb) layout + two (1, tb) outputs double-buffered.
    bytes_per_col = 2 * (4 * d) * 4 + 14 * d * 4 + 2 * 2 * 8 * 4
    tb_cap = max(128, min(8192, (budget // bytes_per_col) // 128 * 128))
    if batch <= 128:
        tb = 128
    else:
        # Aim for >= 2 grid steps so both v7x TensorCores are fed.
        tb = min(tb_cap, _round_up(-(-batch // 2), 128))
    b_pad = _round_up(batch, tb)
    return tb, b_pad, limit


def _gumbel_box_kernel(rep_ref, pos_ref, tag_ref, *, d, gumbel_beta, scale):
    gb = gumbel_beta
    inv_gb = 1.0 / gumbel_beta
    two_gamma_beta = 2.0 * EULER_GAMMA * gb
    log_scale = float(np.log(scale))

    # (TB, 4D) -> (4D, TB): embedding dim on sublanes, id-pairs on lanes, so
    # all EUP/VPU math runs at full 128-lane density and the D reductions go
    # to the (otherwise idle) XLU.  Row layout: [min1 | dl1 | min2 | dl2].
    x = rep_ref[...].T
    min1 = x[0 * d:1 * d, :]
    dl1 = x[1 * d:2 * d, :]
    min2 = x[2 * d:3 * d, :]
    dl2 = x[3 * d:4 * d, :]

    exp_dl2 = jnp.exp(dl2)
    max1 = min1 + jnp.exp(dl1)
    max2 = min2 + exp_dl2

    # gumbel intersection: logsumexp(a, b) = max(a, b) + log1p(exp(-|a-b|)),
    # which is >= max(a, b), so the reference's explicit max()/min() clamps
    # are redundant and dropped.
    z = jnp.maximum(min1, min2) + gb * jnp.log1p(
        jnp.exp(-jnp.abs(min1 - min2) * inv_gb))
    Z = jnp.minimum(max1, max2) - gb * jnp.log1p(
        jnp.exp(-jnp.abs(max1 - max2) * inv_gb))

    def volumes(bl):                         # reductions over D (sublanes)
        tag = jnp.min(bl, axis=0, keepdims=True) > 0.0              # (1, TB)
        # relu(bl).clamp_min(tiny) == max(bl, tiny) since tiny > 0.
        log_ov = jnp.sum(jnp.log(jnp.maximum(bl, F32_TINY)),
                         axis=0, keepdims=True) + log_scale
        dis = jnp.sqrt(jnp.sum(jnp.square(jnp.maximum(-bl, 0.0)),
                               axis=0, keepdims=True))
        return tag, jnp.where(tag, log_ov, dis)

    tag_i, log_inter = volumes(Z - z - two_gamma_beta)
    # box2 side length = max2 - min2 - c = exp(dl2) - c  (reuses exp_dl2).
    _, log_box2 = volumes(exp_dl2 - two_gamma_beta)

    # conditional probability; guard the exp argument for disjoint lanes so no
    # inf is ever materialized (the where would discard it anyway).
    ratio = jnp.exp(jnp.where(tag_i, log_inter - log_box2, 0.0))
    pos = jnp.where(tag_i, ratio, log_inter)                         # (1, TB)

    pos_ref[...] = pos                        # lane-dense (1, TB) outputs
    tag_ref[...] = tag_i.astype(jnp.int32)


def gumbel_box_core(rep, *, d, gumbel_beta, scale, tb, vmem_limit):
    """Pallas hot path.  rep is (b_pad, 4D) f32 rows of [min1 | dl1 | min2 | dl2]."""
    b_pad = rep.shape[0]
    kernel = functools.partial(_gumbel_box_kernel, d=d,
                               gumbel_beta=gumbel_beta, scale=scale)
    pos, tag = pl.pallas_call(
        kernel,
        out_shape=(
            jax.ShapeDtypeStruct((1, b_pad), jnp.float32),
            jax.ShapeDtypeStruct((1, b_pad), jnp.int32),
        ),
        grid_spec=pltpu.PrefetchScalarGridSpec(
            num_scalar_prefetch=0,
            grid=(b_pad // tb,),
            in_specs=[pl.BlockSpec((tb, 4 * d), lambda i: (i, 0))],
            out_specs=[pl.BlockSpec((1, tb), lambda i: (0, i)),
                       pl.BlockSpec((1, tb), lambda i: (0, i))],
        ),
        compiler_params=pltpu.CompilerParams(
            dimension_semantics=("parallel",),
            vmem_limit_bytes=int(vmem_limit)),
    )(rep)
    return pos[0], tag[0]


def _forward_impl(combined, ids, *, embed_dim, gumbel_beta, scale):
    """Device-side forward: ids (B, 2) int32 -> (tag (B,) bool, prediction (B, 2))."""
    batch = ids.shape[0]
    d = embed_dim
    tb, b_pad, vmem_limit = _choose_tile(batch, d)
    if b_pad != batch:
        # Only the tiny int32 ids are padded (id 0 -> finite math); the big
        # float arrays come out of the gather already at the padded size.
        ids = jnp.pad(ids, ((0, b_pad - batch), (0, 0)))
    rep = jnp.take(combined, ids, axis=0)            # (b_pad, 2, 2D) gather
    rep = rep.reshape(b_pad, 4 * d)                  # free row-major reshape
    pos, tag = gumbel_box_core(rep, d=d, gumbel_beta=gumbel_beta, scale=scale,
                               tb=tb, vmem_limit=vmem_limit)
    pos = pos[:batch]
    tag = tag[:batch].astype(bool)
    prediction = jnp.stack([1.0 - pos, pos], axis=1)  # (B, 2)
    return tag, prediction


_forward_jit = jax.jit(_forward_impl,
                       static_argnames=("embed_dim", "gumbel_beta", "scale"))


class GumbelBoxDistPallas:
    """JAX/Pallas port of GumbelBoxDist (forward only)."""

    def __init__(self, vocab_size, embed_dim, min_init_value, delta_init_value,
                 gumbel_beta=0.01, scale=1.0, seed=0):
        k1, k2 = jax.random.split(jax.random.PRNGKey(seed))
        self.min_embedding = jax.random.uniform(
            k1, (vocab_size, embed_dim), jnp.float32,
            minval=min_init_value[0], maxval=min_init_value[1])
        self.delta_embedding = jax.random.uniform(
            k2, (vocab_size, embed_dim), jnp.float32,
            minval=delta_init_value[0], maxval=delta_init_value[1])
        # One (vocab, 2D) table -> a single contiguous row per id in the
        # gather (2x row contiguity, half the gather descriptors).
        self.combined_embedding = jnp.concatenate(
            [self.min_embedding, self.delta_embedding], axis=1)
        self.embed_dim = int(embed_dim)
        self.gumbel_beta = float(gumbel_beta)
        self.scale = float(scale)

    def forward(self, ids, return_tag=False):
        ids = jnp.asarray(ids, jnp.int32)             # (B, 2)
        tag, prediction = _forward_jit(
            self.combined_embedding, ids, embed_dim=self.embed_dim,
            gumbel_beta=self.gumbel_beta, scale=self.scale)
        if return_tag:
            # Hot path: fully async, no device->host round trip.
            return tag, prediction
        # TODO(synk): torch.where-style dynamic-shaped index tuples force a
        # host sync; training loops should call forward(ids, return_tag=True)
        # and materialize these lazily.
        tag_host = np.asarray(jax.device_get(tag)).astype(bool)
        index_overlap = (jnp.asarray(np.nonzero(tag_host)[0], dtype=jnp.int32),)
        index_disjoint = (jnp.asarray(np.nonzero(~tag_host)[0], dtype=jnp.int32),)
        return index_overlap, index_disjoint, prediction


def _reference_forward(module, ids):
    """Pure-JAX reference mirroring the PyTorch code path (B, D layout)."""
    gb, scale = module.gumbel_beta, module.scale
    min_rep = jnp.take(module.min_embedding, ids, axis=0)      # (B, 2, D)
    delta_rep = jnp.take(module.delta_embedding, ids, axis=0)  # (B, 2, D)
    min1, min2 = min_rep[:, 0, :], min_rep[:, 1, :]
    max1 = min1 + jnp.exp(delta_rep[:, 0, :])
    max2 = min2 + jnp.exp(delta_rep[:, 1, :])

    z = gb * jax.scipy.special.logsumexp(
        jnp.stack([min1 / gb, min2 / gb]), axis=0)
    z = jnp.maximum(z, jnp.maximum(min1, min2))
    Z = -gb * jax.scipy.special.logsumexp(
        jnp.stack([-max1 / gb, -max2 / gb]), axis=0)
    Z = jnp.minimum(Z, jnp.minimum(max1, max2))

    def volumes(mn, mx):
        bl = mx - mn - 2 * EULER_GAMMA * gb
        tag = jnp.min(bl, axis=1) > 0.0
        log_ov = jnp.sum(jnp.log(jnp.clip(jnp.maximum(bl, 0.0),
                                          F32_TINY, None)), axis=-1) + np.log(scale)
        dis = jnp.sqrt(jnp.sum(jnp.square(jnp.maximum(-bl, 0.0)), axis=1))
        return tag, jnp.where(tag, log_ov, dis)

    tag_i, log_inter = volumes(z, Z)
    _, log_box2 = volumes(min2, max2)
    pos = jnp.where(tag_i, jnp.exp(log_inter - log_box2), log_inter)
    return jnp.stack([1.0 - pos, pos], axis=1), tag_i


if __name__ == "__main__":
    vocab_size, embed_dim, batch = 20, 32, 8
    module = GumbelBoxDistPallas(
        vocab_size, embed_dim,
        min_init_value=(1e-4, 0.2),
        delta_init_value=(-0.2, 0.0),
        gumbel_beta=0.01, scale=1.0, seed=0)

    ids = jax.random.randint(jax.random.PRNGKey(0), (batch, 2), 0, vocab_size,
                             dtype=jnp.int32)

    # Hot path (async, no host sync).
    tag, prediction = module.forward(ids, return_tag=True)
    prediction = jax.block_until_ready(prediction)

    # API-parity path with torch.where-style index tuples.
    idx_overlap, idx_disjoint, prediction2 = module.forward(ids)

    # correctness check against the pure-JAX reference
    ref_pred, ref_tag = _reference_forward(module, ids)
    np.testing.assert_allclose(np.asarray(prediction), np.asarray(ref_pred),
                               rtol=2e-4, atol=1e-5)
    np.testing.assert_allclose(np.asarray(prediction2), np.asarray(ref_pred),
                               rtol=2e-4, atol=1e-5)
    assert np.array_equal(np.asarray(tag).astype(bool), np.asarray(ref_tag))
    ref_overlap = np.nonzero(np.asarray(ref_tag))[0]
    ref_disjoint = np.nonzero(~np.asarray(ref_tag))[0]
    assert np.array_equal(np.asarray(idx_overlap[0]), ref_overlap)
    assert np.array_equal(np.asarray(idx_disjoint[0]), ref_disjoint)

    print("KERNEL_OK")
</pallas_src>

<mosaic_0001>
module attributes {stable_mosaic.version = 11 : i64} {
  func.func @_gumbel_box_kernel(%arg0: i32, %arg1: memref<128x128xf32, #tpu.memory_space<vmem>>, %arg2: memref<1x128xf32, #tpu.memory_space<vmem>>, %arg3: memref<1x128xi32, #tpu.memory_space<vmem>>) attributes {dimension_semantics = [#tpu.dimension_semantics<parallel>], iteration_bounds = array<i64: 1>, scalar_prefetch = 0 : i64, scratch_operands = 0 : i64, tpu.core_type = #tpu.core_type<tc>, window_params = [{transform_indices = @transform_0, window_bounds = array<i64: 128, 128>}, {transform_indices = @transform_1, window_bounds = array<i64: 1, 128>}, {transform_indices = @transform_2, window_bounds = array<i64: 1, 128>}]} {
    %c0 = arith.constant 0 : index
    %c0_0 = arith.constant 0 : index
    %0 = vector.load %arg1[%c0, %c0_0] : memref<128x128xf32, #tpu.memory_space<vmem>>, vector<128x128xf32>
    %1 = tpu.transpose %0, [1, 0] : vector<128x128xf32> -> vector<128x128xf32>
    %2 = vector.extract_strided_slice %1 {offsets = [0, 0], sizes = [32, 128], strides = [1, 1]} : vector<128x128xf32> to vector<32x128xf32>
    %3 = vector.extract_strided_slice %1 {offsets = [32, 0], sizes = [32, 128], strides = [1, 1]} : vector<128x128xf32> to vector<32x128xf32>
    %4 = vector.extract_strided_slice %1 {offsets = [64, 0], sizes = [32, 128], strides = [1, 1]} : vector<128x128xf32> to vector<32x128xf32>
    %5 = vector.extract_strided_slice %1 {offsets = [96, 0], sizes = [32, 128], strides = [1, 1]} : vector<128x128xf32> to vector<32x128xf32>
    %6 = math.exp %5 : vector<32x128xf32>
    %7 = math.exp %3 : vector<32x128xf32>
    %8 = arith.addf %2, %7 : vector<32x128xf32>
    %9 = arith.addf %4, %6 : vector<32x128xf32>
    %10 = arith.maximumf %2, %4 : vector<32x128xf32>
    %11 = arith.subf %2, %4 : vector<32x128xf32>
    %12 = math.absf %11 : vector<32x128xf32>
    %cst = arith.constant 0.000000e+00 : f32
    %13 = vector.broadcast %cst : f32 to vector<32x128xf32>
    %14 = arith.subf %13, %12 : vector<32x128xf32>
    %cst_1 = arith.constant 1.000000e+02 : f32
    %15 = vector.broadcast %cst_1 : f32 to vector<32x128xf32>
    %16 = arith.mulf %14, %15 : vector<32x128xf32>
    %17 = math.exp %16 : vector<32x128xf32>
    %18 = math.log1p %17 : vector<32x128xf32>
    %cst_2 = arith.constant 0.00999999977 : f32
    %19 = vector.broadcast %cst_2 : f32 to vector<32x128xf32>
    %20 = arith.mulf %19, %18 : vector<32x128xf32>
    %21 = arith.addf %10, %20 : vector<32x128xf32>
    %22 = arith.minimumf %8, %9 : vector<32x128xf32>
    %23 = arith.subf %8, %9 : vector<32x128xf32>
    %24 = math.absf %23 : vector<32x128xf32>
    %cst_3 = arith.constant 0.000000e+00 : f32
    %25 = vector.broadcast %cst_3 : f32 to vector<32x128xf32>
    %26 = arith.subf %25, %24 : vector<32x128xf32>
    %cst_4 = arith.constant 1.000000e+02 : f32
    %27 = vector.broadcast %cst_4 : f32 to vector<32x128xf32>
    %28 = arith.mulf %26, %27 : vector<32x128xf32>
    %29 = math.exp %28 : vector<32x128xf32>
    %30 = math.log1p %29 : vector<32x128xf32>
    %cst_5 = arith.constant 0.00999999977 : f32
    %31 = vector.broadcast %cst_5 : f32 to vector<32x128xf32>
    %32 = arith.mulf %31, %30 : vector<32x128xf32>
    %33 = arith.subf %22, %32 : vector<32x128xf32>
    %34 = arith.subf %33, %21 : vector<32x128xf32>
    %cst_6 = arith.constant 0.0115443133 : f32
    %35 = vector.broadcast %cst_6 : f32 to vector<32x128xf32>
    %36 = arith.subf %34, %35 : vector<32x128xf32>
    %cst_7 = arith.constant dense<0x7F800000> : vector<128xf32>
    %37 = vector.multi_reduction <minimumf>, %36, %cst_7 [0] : vector<32x128xf32> to vector<128xf32>
    %38 = vector.shape_cast %37 : vector<128xf32> to vector<1x128xf32>
    %cst_8 = arith.constant 0.000000e+00 : f32
    %39 = vector.broadcast %cst_8 : f32 to vector<1x128xf32>
    %40 = arith.cmpf ogt, %38, %39 : vector<1x128xf32>
    %cst_9 = arith.constant 1.17549435E-38 : f32
    %41 = vector.broadcast %cst_9 : f32 to vector<32x128xf32>
    %42 = arith.maximumf %36, %41 : vector<32x128xf32>
    %43 = math.log %42 : vector<32x128xf32>
    %cst_10 = arith.constant dense<0.000000e+00> : vector<128xf32>
    %44 = vector.multi_reduction <add>, %43, %cst_10 [0] : vector<32x128xf32> to vector<128xf32>
    %45 = vector.shape_cast %44 : vector<128xf32> to vector<1x128xf32>
    %cst_11 = arith.constant 0.000000e+00 : f32
    %46 = vector.broadcast %cst_11 : f32 to vector<1x128xf32>
    %47 = arith.addf %45, %46 : vector<1x128xf32>
    %cst_12 = arith.constant 0.000000e+00 : f32
    %48 = vector.broadcast %cst_12 : f32 to vector<32x128xf32>
    %49 = arith.subf %48, %36 : vector<32x128xf32>
    %cst_13 = arith.constant 0.000000e+00 : f32
    %50 = vector.broadcast %cst_13 : f32 to vector<32x128xf32>
    %51 = arith.maximumf %49, %50 : vector<32x128xf32>
    %52 = arith.mulf %51, %51 : vector<32x128xf32>
    %cst_14 = arith.constant dense<0.000000e+00> : vector<128xf32>
    %53 = vector.multi_reduction <add>, %52, %cst_14 [0] : vector<32x128xf32> to vector<128xf32>
    %54 = vector.shape_cast %53 : vector<128xf32> to vector<1x128xf32>
    %55 = math.sqrt %54 : vector<1x128xf32>
    %56 = arith.select %40, %47, %55 : vector<1x128xi1>, vector<1x128xf32>
    %cst_15 = arith.constant 0.0115443133 : f32
    %57 = vector.broadcast %cst_15 : f32 to vector<32x128xf32>
    %58 = arith.subf %6, %57 : vector<32x128xf32>
    %cst_16 = arith.constant dense<0x7F800000> : vector<128xf32>
    %59 = vector.multi_reduction <minimumf>, %58, %cst_16 [0] : vector<32x128xf32> to vector<128xf32>
    %60 = vector.shape_cast %59 : vector<128xf32> to vector<1x128xf32>
    %cst_17 = arith.constant 0.000000e+00 : f32
    %61 = vector.broadcast %cst_17 : f32 to vector<1x128xf32>
    %62 = arith.cmpf ogt, %60, %61 : vector<1x128xf32>
    %cst_18 = arith.constant 1.17549435E-38 : f32
    %63 = vector.broadcast %cst_18 : f32 to vector<32x128xf32>
    %64 = arith.maximumf %58, %63 : vector<32x128xf32>
    %65 = math.log %64 : vector<32x128xf32>
    %cst_19 = arith.constant dense<0.000000e+00> : vector<128xf32>
    %66 = vector.multi_reduction <add>, %65, %cst_19 [0] : vector<32x128xf32> to vector<128xf32>
    %67 = vector.shape_cast %66 : vector<128xf32> to vector<1x128xf32>
    %cst_20 = arith.constant 0.000000e+00 : f32
    %68 = vector.broadcast %cst_20 : f32 to vector<1x128xf32>
    %69 = arith.addf %67, %68 : vector<1x128xf32>
    %cst_21 = arith.constant 0.000000e+00 : f32
    %70 = vector.broadcast %cst_21 : f32 to vector<32x128xf32>
    %71 = arith.subf %70, %58 : vector<32x128xf32>
    %cst_22 = arith.constant 0.000000e+00 : f32
    %72 = vector.broadcast %cst_22 : f32 to vector<32x128xf32>
    %73 = arith.maximumf %71, %72 : vector<32x128xf32>
    %74 = arith.mulf %73, %73 : vector<32x128xf32>
    %cst_23 = arith.constant dense<0.000000e+00> : vector<128xf32>
    %75 = vector.multi_reduction <add>, %74, %cst_23 [0] : vector<32x128xf32> to vector<128xf32>
    %76 = vector.shape_cast %75 : vector<128xf32> to vector<1x128xf32>
    %77 = math.sqrt %76 : vector<1x128xf32>
    %78 = arith.select %62, %69, %77 : vector<1x128xi1>, vector<1x128xf32>
    %79 = arith.subf %56, %78 : vector<1x128xf32>
    %cst_24 = arith.constant 0.000000e+00 : f32
    %80 = vector.broadcast %cst_24 : f32 to vector<1x128xf32>
    %81 = arith.select %40, %79, %80 : vector<1x128xi1>, vector<1x128xf32>
    %82 = math.exp %81 : vector<1x128xf32>
    %83 = arith.select %40, %82, %56 : vector<1x128xi1>, vector<1x128xf32>
    %c0_25 = arith.constant 0 : index
    %c0_26 = arith.constant 0 : index
    %84 = vector.load %arg2[%c0_25, %c0_26] : memref<1x128xf32, #tpu.memory_space<vmem>>, vector<1x128xf32>
    tpu.vector_store %arg2[%c0_25, %c0_26], %83 {strides = array<i32>} : memref<1x128xf32, #tpu.memory_space<vmem>>, vector<1x128xf32>,
    %85 = arith.extui %40 : vector<1x128xi1> to vector<1x128xi32>
    %c0_27 = arith.constant 0 : index
    %c0_28 = arith.constant 0 : index
    %86 = vector.load %arg3[%c0_27, %c0_28] : memref<1x128xi32, #tpu.memory_space<vmem>>, vector<1x128xi32>
    tpu.vector_store %arg3[%c0_27, %c0_28], %85 {strides = array<i32>} : memref<1x128xi32, #tpu.memory_space<vmem>>, vector<1x128xi32>,
    return
  }
  func.func @transform_0(%arg0: i32) -> (i32, i32) {
    %c0_i32 = arith.constant 0 : i32
    %c0_i32_0 = arith.constant 0 : i32
    return %arg0, %c0_i32 : i32, i32
  }
  func.func @transform_1(%arg0: i32) -> (i32, i32) {
    %c0_i32 = arith.constant 0 : i32
    %c0_i32_0 = arith.constant 0 : i32
    return %c0_i32, %arg0 : i32, i32
  }
  func.func @transform_2(%arg0: i32) -> (i32, i32) {
    %c0_i32 = arith.constant 0 : i32
    %c0_i32_0 = arith.constant 0 : i32
    return %c0_i32, %arg0 : i32, i32
  }
}

</mosaic_0001>

<llo_original>
// kernel: _forward_impl.1
$region0: #{_forward_impl.1}
  #allocation0 [shape = 'u32[]', space=smem, size = 0x4, offset = 0x4, fixed_abs, tag = 'smem constant byte address 0x4 - core index']
  #allocation1 [shape = 'u32[72,128]{1,0:T(1,128)}', space=vmem, size = 0x9000, scoped, tag = 'internal scratch']
  %s0 = inlined_call_operand.vmem [shape: f32[128,128], index: 0, kind: input, shape index: {}]
  %s1 = inlined_call_operand.vmem [shape: f32[1,128], index: 1, kind: output, shape index: {0}]
  %s2 = inlined_call_operand.vmem [shape: s32[1,128], index: 2, kind: output, shape index: {1}]
  %3 = xla_tuple %s1, %s2
  %s4 = sld [smem:[#allocation0]]
  $region22: #{_forward_impl.1} parent=0
    _
  %s6 = ssub.s32 1, %s4
  %s7 = scalar_select 0, %s6, %s4
  // Predicated region
  $region2: #{_forward_impl.1} parent=0 // pred_check
    _
  $region3: #{_forward_impl.1} parent=0 // pred_check_branch
    %9 = sbr.rel (0) target = $region5
  $region4: #{_forward_impl.1} parent=0 // pred_region
    _
  $region5: #{_forward_impl.1} parent=0 // pred_fallthru
    _
  %v10 = vld [vmem:[%s0] sm:$0xff]
  %v11 = vld [vmem:[%s0 + $0x8] sm:$0xff]
  %v12 = vld [vmem:[%s0 + $0x10] sm:$0xff]
  %v13 = vld [vmem:[%s0 + $0x18] sm:$0xff]
  %v14 = vld [vmem:[%s0 + $0x20] sm:$0xff]
  %v15 = vld [vmem:[%s0 + $0x28] sm:$0xff]
  %v16 = vld [vmem:[%s0 + $0x30] sm:$0xff]
  %v17 = vld [vmem:[%s0 + $0x38] sm:$0xff]
  %v18 = vld [vmem:[%s0 + $0x40] sm:$0xff]
  %v19 = vld [vmem:[%s0 + $0x48] sm:$0xff]
  %v20 = vld [vmem:[%s0 + $0x50] sm:$0xff]
  %v21 = vld [vmem:[%s0 + $0x58] sm:$0xff]
  %v22 = vld [vmem:[%s0 + $0x60] sm:$0xff]
  %v23 = vld [vmem:[%s0 + $0x68] sm:$0xff]
  %v24 = vld [vmem:[%s0 + $0x70] sm:$0xff]
  %v25 = vld [vmem:[%s0 + $0x78] sm:$0xff]
  %26 = vxpose.xlu0.b32.start [1/16] %v10, 128
  %27 = vxpose.xlu0.b32.cont [2/16] %v11, 128
  %28 = vxpose.xlu0.b32.cont [3/16] %v12, 128
  %29 = vxpose.xlu0.b32.cont [4/16] %v13, 128
  %30 = vxpose.xlu0.b32.cont [5/16] %v14, 128
  %31 = vxpose.xlu0.b32.cont [6/16] %v15, 128
  %32 = vxpose.xlu0.b32.cont [7/16] %v16, 128
  %33 = vxpose.xlu0.b32.cont [8/16] %v17, 128
  %34 = vxpose.xlu0.b32.cont [9/16] %v18, 128
  %35 = vxpose.xlu0.b32.cont [10/16] %v19, 128
  %36 = vxpose.xlu0.b32.cont [11/16] %v20, 128
  %37 = vxpose.xlu0.b32.cont [12/16] %v21, 128
  %38 = vxpose.xlu0.b32.cont [13/16] %v22, 128
  %39 = vxpose.xlu0.b32.cont [14/16] %v23, 128
  %40 = vxpose.xlu0.b32.cont [15/16] %v24, 128
  %41 = vxpose.xlu0.b32.end [16/16] %v25, 128
  %v42 = vpop.trf.xlu0
  %v43 = vpop.trf.xlu0
  %v44 = vpop.trf.xlu0
  %v45 = vpop.trf.xlu0
  %v46 = vpop.trf.xlu0
  %v47 = vpop.trf.xlu0
  %v48 = vpop.trf.xlu0
  %v49 = vpop.trf.xlu0
  %v50 = vpop.trf.xlu0
  %v51 = vpop.trf.xlu0
  %v52 = vpop.trf.xlu0
  %v53 = vpop.trf.xlu0
  %v54 = vpop.trf.xlu0
  %v55 = vpop.trf.xlu0
  %v56 = vpop.trf.xlu0
  %v57 = vpop.trf.xlu0
  %v58 = vmul.f32 %v54, 1.442695
  %v59 = vpow.pop %v58
  %v60 = vmul.f32 %v55, 1.442695
  %v61 = vpow.pop %v60
  %v62 = vmul.f32 %v56, 1.442695
  %v63 = vpow.pop %v62
  %v64 = vmul.f32 %v57, 1.442695
  %v65 = vpow.pop %v64
  %v66 = vmul.f32 %v46, 1.442695
  %v67 = vpow.pop %v66
  %v68 = vmul.f32 %v47, 1.442695
  %v69 = vpow.pop %v68
  %v70 = vmul.f32 %v48, 1.442695
  %v71 = vpow.pop %v70
  %v72 = vmul.f32 %v49, 1.442695
  %v73 = vpow.pop %v72
  %v74 = vadd.f32 %v42, %v67
  %v75 = vadd.f32 %v43, %v69
  %v76 = vadd.f32 %v44, %v71
  %v77 = vadd.f32 %v45, %v73
  %v78 = vadd.f32 %v50, %v59
  %v79 = vadd.f32 %v51, %v61
  %v80 = vadd.f32 %v52, %v63
  %v81 = vadd.f32 %v53, %v65
  %v82 = vmax.f32 %v42, %v50
  %v83 = vmax.f32 %v43, %v51
  %v84 = vmax.f32 %v44, %v52
  %v85 = vmax.f32 %v45, %v53
  %v86 = vsub.f32 %v42, %v50
  %v87 = vsub.f32 %v43, %v51
  %v88 = vsub.f32 %v44, %v52
  %v89 = vsub.f32 %v45, %v53
  %v90 = vand.u32 2147483647, %v86
  %v91 = vand.u32 2147483647, %v87
  %v92 = vand.u32 2147483647, %v88
  %v93 = vand.u32 2147483647, %v89
  %v94 = vsub.f32 0.0, %v90
  %v95 = vsub.f32 0.0, %v91
  %v96 = vsub.f32 0.0, %v92
  %v97 = vsub.f32 0.0, %v93
  %v98 = vmul.f32 %v94, 100.0
  %v99 = vmul.f32 %v95, 100.0
  %v100 = vmul.f32 %v96, 100.0
  %v101 = vmul.f32 %v97, 100.0
  %v102 = vmul.f32 %v98, 1.442695
  %v103 = vpow.pop %v102
  %v104 = vmul.f32 %v99, 1.442695
  %v105 = vpow.pop %v104
  %v106 = vmul.f32 %v100, 1.442695
  %v107 = vpow.pop %v106
  %v108 = vmul.f32 %v101, 1.442695
  %v109 = vpow.pop %v108
  %v110 = vadd.f32 %v103, 1.0
  %v111 = vlog2.pop %v110
  %v112 = vmul.f32 %v111, 0.6931472
  %v113 = vmul.f32 -0.5, %v103
  %v114 = vadd.f32 %v113, 1.0
  %v115 = vmul.f32 %v114, %v103
  %v116 = vand.u32 2147483647, %v103
  %vm117 = vcmp.lt.f32.partialorder %v116, 0.0004427343
  %v118 = vsel %vm117, %v115, %v112
  %v119 = vadd.f32 %v105, 1.0
  %v120 = vlog2.pop %v119
  %v121 = vmul.f32 %v120, 0.6931472
  %v122 = vmul.f32 -0.5, %v105
  %v123 = vadd.f32 %v122, 1.0
  %v124 = vmul.f32 %v123, %v105
  %v125 = vand.u32 2147483647, %v105
  %vm126 = vcmp.lt.f32.partialorder %v125, 0.0004427343
  %v127 = vsel %vm126, %v124, %v121
  %v128 = vadd.f32 %v107, 1.0
  %v129 = vlog2.pop %v128
  %v130 = vmul.f32 %v129, 0.6931472
  %v131 = vmul.f32 -0.5, %v107
  %v132 = vadd.f32 %v131, 1.0
  %v133 = vmul.f32 %v132, %v107
  %v134 = vand.u32 2147483647, %v107
  %vm135 = vcmp.lt.f32.partialorder %v134, 0.0004427343
  %v136 = vsel %vm135, %v133, %v130
  %v137 = vadd.f32 %v109, 1.0
  %v138 = vlog2.pop %v137
  %v139 = vmul.f32 %v138, 0.6931472
  %v140 = vmul.f32 -0.5, %v109
  %v141 = vadd.f32 %v140, 1.0
  %v142 = vmul.f32 %v141, %v109
  %v143 = vand.u32 2147483647, %v109
  %vm144 = vcmp.lt.f32.partialorder %v143, 0.0004427343
  %v145 = vsel %vm144, %v142, %v139
  %v146 = vmul.f32 %v118, 0.01
  %v147 = vmul.f32 %v127, 0.01
  %v148 = vmul.f32 %v136, 0.01
  %v149 = vmul.f32 %v145, 0.01
  %v150 = vadd.f32 %v82, %v146
  %v151 = vadd.f32 %v83, %v147
  %v152 = vadd.f32 %v84, %v148
  %v153 = vadd.f32 %v85, %v149
  %v154 = vmin.f32 %v74, %v78
  %v155 = vmin.f32 %v75, %v79
  %v156 = vmin.f32 %v76, %v80
  %v157 = vmin.f32 %v77, %v81
  %v158 = vsub.f32 %v74, %v78
  %v159 = vsub.f32 %v75, %v79
  %v160 = vsub.f32 %v76, %v80
  %v161 = vsub.f32 %v77, %v81
  %v162 = vand.u32 2147483647, %v158
  %v163 = vand.u32 2147483647, %v159
  %v164 = vand.u32 2147483647, %v160
  %v165 = vand.u32 2147483647, %v161
  %v166 = vsub.f32 0.0, %v162
  %v167 = vsub.f32 0.0, %v163
  %v168 = vsub.f32 0.0, %v164
  %v169 = vsub.f32 0.0, %v165
  %v170 = vmul.f32 %v166, 100.0
  %v171 = vmul.f32 %v167, 100.0
  %v172 = vmul.f32 %v168, 100.0
  %v173 = vmul.f32 %v169, 100.0
  %v174 = vmul.f32 %v170, 1.442695
  %v175 = vpow.pop %v174
  %v176 = vmul.f32 %v171, 1.442695
  %v177 = vpow.pop %v176
  %v178 = vmul.f32 %v172, 1.442695
  %v179 = vpow.pop %v178
  %v180 = vmul.f32 %v173, 1.442695
  %v181 = vpow.pop %v180
  %v182 = vadd.f32 %v175, 1.0
  %v183 = vlog2.pop %v182
  %v184 = vmul.f32 %v183, 0.6931472
  %v185 = vmul.f32 -0.5, %v175
  %v186 = vadd.f32 %v185, 1.0
  %v187 = vmul.f32 %v186, %v175
  %v188 = vand.u32 2147483647, %v175
  %vm189 = vcmp.lt.f32.partialorder %v188, 0.0004427343
  %v190 = vsel %vm189, %v187, %v184
  %v191 = vadd.f32 %v177, 1.0
  %v192 = vlog2.pop %v191
  %v193 = vmul.f32 %v192, 0.6931472
  %v194 = vmul.f32 -0.5, %v177
  %v195 = vadd.f32 %v194, 1.0
  %v196 = vmul.f32 %v195, %v177
  %v197 = vand.u32 2147483647, %v177
  %vm198 = vcmp.lt.f32.partialorder %v197, 0.0004427343
  %v199 = vsel %vm198, %v196, %v193
  %v200 = vadd.f32 %v179, 1.0
  %v201 = vlog2.pop %v200
  %v202 = vmul.f32 %v201, 0.6931472
  %v203 = vmul.f32 -0.5, %v179
  %v204 = vadd.f32 %v203, 1.0
  %v205 = vmul.f32 %v204, %v179
  %v206 = vand.u32 2147483647, %v179
  %vm207 = vcmp.lt.f32.partialorder %v206, 0.0004427343
  %v208 = vsel %vm207, %v205, %v202
  %v209 = vadd.f32 %v181, 1.0
  %v210 = vlog2.pop %v209
  %v211 = vmul.f32 %v210, 0.6931472
  %v212 = vmul.f32 -0.5, %v181
  %v213 = vadd.f32 %v212, 1.0
  %v214 = vmul.f32 %v213, %v181
  %v215 = vand.u32 2147483647, %v181
  %vm216 = vcmp.lt.f32.partialorder %v215, 0.0004427343
  %v217 = vsel %vm216, %v214, %v211
  %v218 = vmul.f32 %v190, 0.01
  %v219 = vmul.f32 %v199, 0.01
  %v220 = vmul.f32 %v208, 0.01
  %v221 = vmul.f32 %v217, 0.01
  %v222 = vsub.f32 %v154, %v218
  %v223 = vsub.f32 %v155, %v219
  %v224 = vsub.f32 %v156, %v220
  %v225 = vsub.f32 %v157, %v221
  %v226 = vsub.f32 %v222, %v150
  %v227 = vsub.f32 %v223, %v151
  %v228 = vsub.f32 %v224, %v152
  %v229 = vsub.f32 %v225, %v153
  %v230 = vsub.f32 %v226, 0.011544313
  %v231 = vsub.f32 %v227, 0.011544313
  %v232 = vsub.f32 %v228, 0.011544313
  %v233 = vsub.f32 %v229, 0.011544313
  %v234 = vmin.f32 %v230, %v231
  %v235 = vmin.f32 %v232, %v233
  %v236 = vmin.f32 %v234, %v235
  %v237 = vrot.slane %v236, 4
  %v238 = vmin.f32 %v236, %v237
  %v239 = vrot.slane %v238, 2
  %v240 = vmin.f32 %v238, %v239
  %v241 = vrot.slane %v240, 1
  %v242 = vmin.f32 %v240, %v241
  %vm243 = vcmp.gt.f32.partialorder %v242, 0.0
  %v244 = vmax.f32 %v230, 1.1754944e-38
  %v245 = vmax.f32 %v231, 1.1754944e-38
  %v246 = vmax.f32 %v232, 1.1754944e-38
  %v247 = vmax.f32 %v233, 1.1754944e-38
  %v248 = vlog2.pop %v244
  %v249 = vmul.f32 %v248, 0.6931472
  %v250 = vlog2.pop %v245
  %v251 = vmul.f32 %v250, 0.6931472
  %v252 = vlog2.pop %v246
  %v253 = vmul.f32 %v252, 0.6931472
  %v254 = vlog2.pop %v247
  %v255 = vmul.f32 %v254, 0.6931472
  %v256 = vadd.f32 %v249, %v251
  %v257 = vadd.f32 %v256, %v253
  %v258 = vadd.f32 %v257, %v255
  %v259 = vrot.slane %v258, 4
  %v260 = vadd.f32 %v258, %v259
  %v261 = vrot.slane %v260, 2
  %v262 = vadd.f32 %v260, %v261
  %v263 = vrot.slane %v262, 1
  %v264 = vadd.f32 %v262, %v263
  %v265 = vadd.f32 %v264, 0.0
  %v266 = vsub.f32 0.0, %v230
  %v267 = vsub.f32 0.0, %v231
  %v268 = vsub.f32 0.0, %v232
  %v269 = vsub.f32 0.0, %v233
  %v270 = vmax.f32 %v266, 0.0
  %v271 = vmax.f32 %v267, 0.0
  %v272 = vmax.f32 %v268, 0.0
  %v273 = vmax.f32 %v269, 0.0
  %v274 = vmul.f32 %v270, %v270
  %v275 = vmul.f32 %v271, %v271
  %v276 = vmul.f32 %v272, %v272
  %v277 = vmul.f32 %v273, %v273
  %v278 = vadd.f32 %v274, %v275
  %v279 = vadd.f32 %v278, %v276
  %v280 = vadd.f32 %v279, %v277
  %v281 = vrot.slane %v280, 4
  %v282 = vadd.f32 %v280, %v281
  %v283 = vrot.slane %v282, 2
  %v284 = vadd.f32 %v282, %v283
  %v285 = vrot.slane %v284, 1
  %v286 = vadd.f32 %v284, %v285
  %v287 = vrsqrt.pop %v286
  %v288 = vmul.f32 %v287, %v286
  %v289 = vmul.f32 %v288, %v287
  %v290 = vmul.f32 0.5, %v289
  %v291 = vsub.f32 1.5, %v290
  %v292 = vmul.f32 %v287, %v291
  %v293 = vmul.f32 %v286, %v292
  %vm294 = vcmp.eq.f32.partialorder %v286, inf
  %v295 = vsel %vm294, %v286, %v293
  %vm296 = vcmp.eq.f32.partialorder %v286, 0.0
  %v297 = vand.u32 %v286, 2147483648
  %v298 = vsel %vm296, %v297, %v295
  %v299 = vsel %vm243, %v265, %v298
  %v300 = vsub.f32 %v59, 0.011544313
  %v301 = vsub.f32 %v61, 0.011544313
  %v302 = vsub.f32 %v63, 0.011544313
  %v303 = vsub.f32 %v65, 0.011544313
  %v304 = vmin.f32 %v300, %v301
  %v305 = vmin.f32 %v302, %v303
  %v306 = vmin.f32 %v304, %v305
  %v307 = vrot.slane %v306, 4
  %v308 = vmin.f32 %v306, %v307
  %v309 = vrot.slane %v308, 2
  %v310 = vmin.f32 %v308, %v309
  %v311 = vrot.slane %v310, 1
  %v312 = vmin.f32 %v310, %v311
  %vm313 = vcmp.gt.f32.partialorder %v312, 0.0
  %v314 = vmax.f32 %v300, 1.1754944e-38
  %v315 = vmax.f32 %v301, 1.1754944e-38
  %v316 = vmax.f32 %v302, 1.1754944e-38
  %v317 = vmax.f32 %v303, 1.1754944e-38
  %v318 = vlog2.pop %v314
  %v319 = vmul.f32 %v318, 0.6931472
  %v320 = vlog2.pop %v315
  %v321 = vmul.f32 %v320, 0.6931472
  %v322 = vlog2.pop %v316
  %v323 = vmul.f32 %v322, 0.6931472
  %v324 = vlog2.pop %v317
  %v325 = vmul.f32 %v324, 0.6931472
  %v326 = vadd.f32 %v319, %v321
  %v327 = vadd.f32 %v326, %v323
  %v328 = vadd.f32 %v327, %v325
  %v329 = vrot.slane %v328, 4
  %v330 = vadd.f32 %v328, %v329
  %v331 = vrot.slane %v330, 2
  %v332 = vadd.f32 %v330, %v331
  %v333 = vrot.slane %v332, 1
  %v334 = vadd.f32 %v332, %v333
  %v335 = vadd.f32 %v334, 0.0
  %v336 = vsub.f32 0.0, %v300
  %v337 = vsub.f32 0.0, %v301
  %v338 = vsub.f32 0.0, %v302
  %v339 = vsub.f32 0.0, %v303
  %v340 = vmax.f32 %v336, 0.0
  %v341 = vmax.f32 %v337, 0.0
  %v342 = vmax.f32 %v338, 0.0
  %v343 = vmax.f32 %v339, 0.0
  %v344 = vmul.f32 %v340, %v340
  %v345 = vmul.f32 %v341, %v341
  %v346 = vmul.f32 %v342, %v342
  %v347 = vmul.f32 %v343, %v343
  %v348 = vadd.f32 %v344, %v345
  %v349 = vadd.f32 %v348, %v346
  %v350 = vadd.f32 %v349, %v347
  %v351 = vrot.slane %v350, 4
  %v352 = vadd.f32 %v350, %v351
  %v353 = vrot.slane %v352, 2
  %v354 = vadd.f32 %v352, %v353
  %v355 = vrot.slane %v354, 1
  %v356 = vadd.f32 %v354, %v355
  %v357 = vrsqrt.pop %v356
  %v358 = vmul.f32 %v357, %v356
  %v359 = vmul.f32 %v358, %v357
  %v360 = vmul.f32 0.5, %v359
  %v361 = vsub.f32 1.5, %v360
  %v362 = vmul.f32 %v357, %v361
  %v363 = vmul.f32 %v356, %v362
  %vm364 = vcmp.eq.f32.partialorder %v356, inf
  %v365 = vsel %vm364, %v356, %v363
  %vm366 = vcmp.eq.f32.partialorder %v356, 0.0
  %v367 = vand.u32 %v356, 2147483648
  %v368 = vsel %vm366, %v367, %v365
  %v369 = vsel %vm313, %v335, %v368
  %v370 = vsub.f32 %v299, %v369
  %v371 = vsel %vm243, %v370, 0.0
  %v372 = vmul.f32 %v371, 1.442695
  %v373 = vpow.pop %v372
  %v374 = vsel %vm243, %v373, %v298
  %375 = vst [vmem:[%s1] sm:$0x1] %v374
  %v376 = vsel %vm243, 1, 0
  %377 = vst [vmem:[%s2] sm:$0x1] %v376
  // Predicated region
  $region6: #{_forward_impl.1} parent=0 // pred_check
    _
  $region7: #{_forward_impl.1} parent=0 // pred_check_branch
    %379 = sbr.rel (0) target = $region9
  $region8: #{_forward_impl.1} parent=0 // pred_region
    _
  $region9: #{_forward_impl.1} parent=0 // pred_fallthru
    _
  // Predicated region
  $region10: #{_forward_impl.1} parent=0 // pred_check
    _
  $region11: #{_forward_impl.1} parent=0 // pred_check_branch
    %381 = sbr.rel (0) target = $region13
  $region12: #{_forward_impl.1} parent=0 // pred_region
    _
  $region13: #{_forward_impl.1} parent=0 // pred_fallthru
    _
  // Predicated region
  $region14: #{_forward_impl.1} parent=0 // pred_check
    _
  $region15: #{_forward_impl.1} parent=0 // pred_check_branch
    %383 = sbr.rel (0) target = $region17
  $region16: #{_forward_impl.1} parent=0 // pred_region
    _
  $region17: #{_forward_impl.1} parent=0 // pred_fallthru
    _
  // Predicated region
  $region18: #{_forward_impl.1} parent=0 // pred_check
    _
  $region19: #{_forward_impl.1} parent=0 // pred_check_branch
    %385 = sbr.rel (0) target = $region21
  $region20: #{_forward_impl.1} parent=0 // pred_region
    _
  $region21: #{_forward_impl.1} parent=0 // pred_fallthru
    _

</llo_original>
